<compile_context>
chip_gen: v7x
topology: tpu7x:2x2x1
jax: 0.10.0
libtpu: 0.0.40
codegen_flags: <defaults>
</compile_context>

<pallas_src>
import jax
import jax.numpy as jnp
from jax.experimental import pallas as pl
from jax.experimental.pallas import tpu as pltpu


def _round_up(x, m):
    return ((x + m - 1) // m) * m


def _vmem_capacity_bytes():
    try:
        info = pltpu.get_tpu_info()
        return int(getattr(info, "vmem_capacity_bytes", 64 << 20))
    except Exception:
        return 64 << 20  # v7x floor: be conservative if the query fails.


def fused_head_kernel(feat_ref, w_ref, b_ref, o_ref):
    """feat_ref: (Bt, K=C*HW); w_ref: (K, Npad); b_ref: (1, Npad); o_ref: (Bt, Npad)."""
    f = feat_ref[...]
    # F.relu in the feature's native dtype (bf16 VALUs on v6e/v7x; f32 on v5e).
    f = jnp.maximum(f, jnp.zeros((), f.dtype))
    w = w_ref[...]
    # avg_pool2d + the three classifier heads, all folded into one MXU matmul
    # (1/HW is pre-folded into w), f32 accumulation.
    o_ref[...] = (
        jnp.dot(f.astype(w.dtype), w, preferred_element_type=jnp.float32)
        + b_ref[...].astype(jnp.float32)
    )


def fuse_cls_params(w0, b0, w1, b1, w2, b2, hw, *, lane_multiple=128,
                    weight_dtype=None):
    """One-time prep: concat the three heads, pad to a lane-dense width and
    fold the average pool into an expanded (C*HW, Npad) weight.

    w_i : (C, n_i)  -- torch Linear weight transposed to (in, out)
    b_i : (1, n_i)
    hw  : featmap * featmap (the avg_pool2d window == whole spatial extent)
    weight_dtype : optionally cast the fused weight (e.g. jnp.bfloat16 on v5e
                   so the MXU runs a single bf16 pass instead of f32 emulation).
    Returns (w_exp (C*HW, Npad), b_fused (1, Npad), splits (n0, n1, n2)).
    """
    splits = (w0.shape[1], w1.shape[1], w2.shape[1])
    n_total = sum(splits)
    n_pad = max(_round_up(n_total, lane_multiple), lane_multiple)
    w = jnp.concatenate([w0, w1, w2], axis=1)          # (C, n_total)
    b = jnp.concatenate([b0, b1, b2], axis=1)          # (1, n_total)
    w = jnp.pad(w, ((0, 0), (0, n_pad - n_total)))
    b = jnp.pad(b, ((0, 0), (0, n_pad - n_total)))
    # Fold the mean over HW into the matmul: W_exp[c*hw + j, :] = W[c, :] / hw.
    w_exp = jnp.repeat(w, hw, axis=0) * (1.0 / hw)     # (C*hw, n_pad)
    if weight_dtype is not None:
        w_exp = w_exp.astype(weight_dtype)
    return w_exp, b.astype(jnp.float32), splits


def _choose_tiling(B, whole_bytes, vmem, batch_tile):
    """Returns (use_grid, bt)."""
    if batch_tile is not None:
        bt = _round_up(max(1, min(batch_tile, B)), 8)
        if bt >= B and whole_bytes <= vmem // 4:
            return False, None
        return True, bt
    # Auto: tiny batches -> single no-grid call; otherwise MXU-filling tiles
    # with at least 2 "parallel" steps so both v7x TensorCores get work.
    if B <= 8 and whole_bytes <= vmem // 4:
        return False, None
    bt = min(256, max(8, _round_up(pl.cdiv(B, 2), 8)))
    return True, bt


def single_channel_model_head(feature_nchw, w_exp, b_fused, splits, *,
                              batch_tile=None):
    """Pallas implementation of single_channel_model.forward() after self.base().

    feature_nchw : (B, C, H, W)  -- output of self.base(x)
    w_exp        : (C*H*W, Npad) -- from fuse_cls_params (pool folded in)
    b_fused      : (1, Npad)
    splits       : (n0, n1, n2)
    batch_tile   : None -> auto (no-grid for tiny B, batch-tiled "parallel"
                   grid otherwise); or an explicit batch tile size.
    Returns (out1, out2, out3) with shapes (B, n0), (B, n1), (B, 2).
    """
    B, C, H, W = feature_nchw.shape
    K = C * H * W
    assert w_exp.shape[0] == K, (w_exp.shape, K)
    n_pad = w_exp.shape[1]
    # Contiguous reshape only -- lane-dense (B, C*HW), no transpose.
    feat = feature_nchw.reshape(B, K)

    feat_bytes = jnp.dtype(feat.dtype).itemsize
    w_bytes = jnp.dtype(w_exp.dtype).itemsize
    whole = (B * K * feat_bytes + K * n_pad * w_bytes
             + n_pad * 4 + B * n_pad * 4)
    vmem = _vmem_capacity_bytes()
    use_grid, bt = _choose_tiling(B, whole, vmem, batch_tile)

    cost = pl.CostEstimate(
        flops=2 * B * K * n_pad,
        transcendentals=0,
        bytes_accessed=(B * K * feat_bytes + K * n_pad * w_bytes
                        + n_pad * 4 + B * n_pad * 4),
    )

    if not use_grid:
        vmem_limit = int(min(max(2 * whole + (2 << 20), 32 << 20), vmem // 2))
        out = pl.pallas_call(
            fused_head_kernel,
            out_shape=jax.ShapeDtypeStruct((B, n_pad), jnp.float32),
            in_specs=[
                pl.BlockSpec(memory_space=pltpu.MemorySpace.VMEM),
                pl.BlockSpec(memory_space=pltpu.MemorySpace.VMEM),
                pl.BlockSpec(memory_space=pltpu.MemorySpace.VMEM),
            ],
            out_specs=pl.BlockSpec(memory_space=pltpu.MemorySpace.VMEM),
            compiler_params=pltpu.CompilerParams(vmem_limit_bytes=vmem_limit),
            cost_estimate=cost,
        )(feat, w_exp, b_fused)
        out_valid = out
    else:
        B_pad = _round_up(B, bt)
        if B_pad != B:
            # Zero-pad so the last block has no masked stores / OOB reads;
            # the padded rows are sliced off below.
            feat = jnp.pad(feat, ((0, B_pad - B), (0, 0)))
        need = (2 * (bt * K * feat_bytes + bt * n_pad * 4)
                + 2 * (K * n_pad * w_bytes + n_pad * 4))
        vmem_limit = int(min(max(2 * need + (2 << 20), 32 << 20), vmem // 2))
        out = pl.pallas_call(
            fused_head_kernel,
            out_shape=jax.ShapeDtypeStruct((B_pad, n_pad), jnp.float32),
            grid=(B_pad // bt,),
            in_specs=[
                pl.BlockSpec((bt, K), lambda i: (i, 0)),
                pl.BlockSpec((K, n_pad), lambda i: (0, 0)),
                pl.BlockSpec((1, n_pad), lambda i: (0, 0)),
            ],
            out_specs=pl.BlockSpec((bt, n_pad), lambda i: (i, 0)),
            compiler_params=pltpu.CompilerParams(
                dimension_semantics=("parallel",),
                vmem_limit_bytes=vmem_limit),
            cost_estimate=cost,
        )(feat, w_exp, b_fused)
        out_valid = out[:B]

    n0, n1, n2 = splits
    out1 = out_valid[:, :n0]
    out2 = out_valid[:, n0:n0 + n1]
    out3 = out_valid[:, n0 + n1:n0 + n1 + n2]
    return out1, out2, out3


def reference_head(feature_nchw, w0, b0, w1, b1, w2, b2):
    """Pure-JAX replica of the torch forward (after base) for verification."""
    B = feature_nchw.shape[0]
    out = jnp.maximum(feature_nchw.astype(jnp.float32), 0.0)
    out = jnp.mean(out, axis=(2, 3)).reshape(B, -1)  # avg_pool2d(k=featmap).view
    return (out @ w0 + b0, out @ w1 + b1, out @ w2 + b2)


if __name__ == "__main__":
    # Model configuration (name='rsn18' -> planes=512; inmap=64 -> featmap=2).
    planes = 512          # self.planes for rsn18/rsn34
    featmap = 2           # inmap // 32 with inmap = 64
    hw = featmap * featmap
    multi_classes = (5, 4)
    n_bin = 2

    key = jax.random.PRNGKey(0)
    kf, kf2, kf3, k0, k1, k2 = jax.random.split(key, 6)

    # initialize_cls_weights: nn.Linear -> weight ~ N(0, 0.01), bias = 0.
    # Torch Linear weight is (out, in); stored transposed (in, out) here.
    w0 = 0.01 * jax.random.normal(k0, (planes, multi_classes[0]), jnp.float32)
    b0 = jnp.zeros((1, multi_classes[0]), jnp.float32)
    w1 = 0.01 * jax.random.normal(k1, (planes, multi_classes[1]), jnp.float32)
    b1 = jnp.zeros((1, multi_classes[1]), jnp.float32)
    w2 = 0.01 * jax.random.normal(k2, (planes, n_bin), jnp.float32)
    b2 = jnp.zeros((1, n_bin), jnp.float32)

    # One-time fusion/padding + pool-folding of the three classifier heads.
    w_exp, b_fused, splits = fuse_cls_params(w0, b0, w1, b1, w2, b2, hw)

    # --- Test 1: small batch, single-invocation (no grid) path ----------------
    B = 2
    feature = jax.random.normal(kf, (B, planes, featmap, featmap), jnp.float32)
    out1, out2, out3 = single_channel_model_head(feature, w_exp, b_fused, splits)
    jax.block_until_ready((out1, out2, out3))

    r1, r2, r3 = reference_head(feature, w0, b0, w1, b1, w2, b2)
    assert out1.shape == (B, multi_classes[0])
    assert out2.shape == (B, multi_classes[1])
    assert out3.shape == (B, n_bin)
    assert jnp.allclose(out1, r1, atol=1e-4)
    assert jnp.allclose(out2, r2, atol=1e-4)
    assert jnp.allclose(out3, r3, atol=1e-4)

    # --- Test 2: larger batch, explicit batch-tiled "parallel" grid path ------
    B2 = 16
    feature2 = jax.random.normal(kf2, (B2, planes, featmap, featmap), jnp.float32)
    p1, p2, p3 = single_channel_model_head(
        feature2, w_exp, b_fused, splits, batch_tile=8)
    jax.block_until_ready((p1, p2, p3))
    q1, q2, q3 = reference_head(feature2, w0, b0, w1, b1, w2, b2)
    assert jnp.allclose(p1, q1, atol=1e-4)
    assert jnp.allclose(p2, q2, atol=1e-4)
    assert jnp.allclose(p3, q3, atol=1e-4)

    # --- Test 3: non-divisible batch, auto tiling (zero-padded last block) ----
    B3 = 20
    feature3 = jax.random.normal(kf3, (B3, planes, featmap, featmap), jnp.float32)
    s1, s2, s3 = single_channel_model_head(feature3, w_exp, b_fused, splits)
    jax.block_until_ready((s1, s2, s3))
    t1, t2, t3 = reference_head(feature3, w0, b0, w1, b1, w2, b2)
    assert s1.shape == (B3, multi_classes[0])
    assert jnp.allclose(s1, t1, atol=1e-4)
    assert jnp.allclose(s2, t2, atol=1e-4)
    assert jnp.allclose(s3, t3, atol=1e-4)

    # --- Test 4: bf16 feature + bf16 fused weights (native bf16 MXU path) -----
    w_exp_bf, b_bf, _ = fuse_cls_params(
        w0, b0, w1, b1, w2, b2, hw, weight_dtype=jnp.bfloat16)
    feature_bf = feature2.astype(jnp.bfloat16)
    u1, u2, u3 = single_channel_model_head(
        feature_bf, w_exp_bf, b_bf, splits, batch_tile=8)
    jax.block_until_ready((u1, u2, u3))
    v1, v2, v3 = reference_head(
        feature_bf.astype(jnp.float32), w0, b0, w1, b1, w2, b2)
    assert jnp.allclose(u1, v1, atol=1e-2)
    assert jnp.allclose(u2, v2, atol=1e-2)
    assert jnp.allclose(u3, v3, atol=1e-2)

    print("KERNEL_OK")
</pallas_src>

<mosaic_0001>
module attributes {stable_mosaic.version = 11 : i64} {
  func.func @fused_head_kernel(%arg0: memref<2x2048xf32, #tpu.memory_space<vmem>>, %arg1: memref<2048x128xf32, #tpu.memory_space<vmem>>, %arg2: memref<1x128xf32, #tpu.memory_space<vmem>>, %arg3: memref<2x128xf32, #tpu.memory_space<vmem>>) attributes {dimension_semantics = [], scalar_prefetch = 0 : i64, scratch_operands = 0 : i64, tpu.core_type = #tpu.core_type<tc>} {
    %c0 = arith.constant 0 : index
    %c0_0 = arith.constant 0 : index
    %0 = vector.load %arg0[%c0, %c0_0] : memref<2x2048xf32, #tpu.memory_space<vmem>>, vector<2x2048xf32>
    %cst = arith.constant 0.000000e+00 : f32
    %1 = vector.broadcast %cst : f32 to vector<2x2048xf32>
    %2 = arith.maximumf %0, %1 : vector<2x2048xf32>
    %c0_1 = arith.constant 0 : index
    %c0_2 = arith.constant 0 : index
    %3 = vector.load %arg1[%c0_1, %c0_2] : memref<2048x128xf32, #tpu.memory_space<vmem>>, vector<2048x128xf32>
    %cst_3 = arith.constant dense<0.000000e+00> : vector<2x128xf32>
    %4 = tpu.matmul %2, %3, %cst_3 {dimension_numbers = #tpu.dot_dimension_numbers<[1], [0], [0], [1], [0, 0, 1, 1], [], []>} : vector<2x2048xf32>, vector<2048x128xf32>, vector<2x128xf32> -> vector<2x128xf32>
    %c0_4 = arith.constant 0 : index
    %c0_5 = arith.constant 0 : index
    %5 = vector.load %arg2[%c0_4, %c0_5] : memref<1x128xf32, #tpu.memory_space<vmem>>, vector<1x128xf32>
    %6 = vector.broadcast %5 : vector<1x128xf32> to vector<2x128xf32>
    %7 = arith.addf %4, %6 : vector<2x128xf32>
    %c0_6 = arith.constant 0 : index
    %c0_7 = arith.constant 0 : index
    %8 = vector.load %arg3[%c0_6, %c0_7] : memref<2x128xf32, #tpu.memory_space<vmem>>, vector<2x128xf32>
    tpu.vector_store %arg3[%c0_6, %c0_7], %7 {strides = array<i32>} : memref<2x128xf32, #tpu.memory_space<vmem>>, vector<2x128xf32>,
    return
  }
}

</mosaic_0001>

<llo_original>
// kernel: tpu_custom_call.1
$region0: #{tpu_custom_call.1}
  #allocation0 [shape = 'u32[]', space=smem, size = 0x4, offset = 0x4, fixed_abs, tag = 'smem constant byte address 0x4 - core index']
  #allocation1 [shape = 'u32[144,128]{1,0:T(1,128)}', space=vmem, size = 0x12000, scoped, tag = 'internal scratch']
  %s0 = inlined_call_operand.hbm [shape: f32[2,2048], index: 0, kind: input, shape index: {}]
  %s1 = inlined_call_operand.hbm [shape: f32[2048,128], index: 1, kind: input, shape index: {}]
  %s2 = inlined_call_operand.vmem [shape: f32[1,128], index: 2, kind: input, shape index: {}]
  %s3 = inlined_call_operand.hbm [shape: f32[2,128], index: 3, kind: output, shape index: {}]
  %s4 = sld [smem:[#allocation0]]
  $region30: #{tpu_custom_call.1} parent=0
    _
  %s6 = ssub.s32 1, %s4
  %s7 = scalar_select 0, %s6, %s4
  $region1: #{tpu_custom_call.1} parent=0
    #allocation2 [shape = 'u8[16384]{0}', space=vmem, size = 0x4000, scoped, tag = 'input window, operand 0, single buffered']
    #allocation3 [shape = 's32[1]{0}', space=sflag, size = 0x4, scoped, tag = 'scoped memory for tpu_custom_call.1']
    #allocation4 [shape = 's32[1]{0}', space=sflag, size = 0x4, scoped, tag = 'scoped memory for tpu_custom_call.1']
    #allocation5 [shape = 'u8[1048576]{0}', space=vmem, size = 0x100000, scoped, tag = 'input window, operand 1, single buffered']
    #allocation6 [shape = 's32[1]{0}', space=sflag, size = 0x4, scoped, tag = 'scoped memory for tpu_custom_call.1']
    #allocation7 [shape = 'u8[1024]{0}', space=vmem, size = 0x400, scoped, tag = 'output window, operand 0, single buffered']
    %8 = vsyncpa [#allocation3], 0
    %9 = vsyncpa [#allocation6], 0
    %10 = vsyncpa [#allocation4], 0
    // Predicated region
    $region2: #{tpu_custom_call.1} parent=1 // pred_check
      _
    $region3: #{tpu_custom_call.1} parent=1 // pred_check_branch
      %12 = sbr.rel (0) target = $region5
    $region4: #{tpu_custom_call.1} parent=1 // pred_region
      %s14 = ssub.s32 512, 512
      %15 = vsyncadd [#allocation3], %s14
      %s17 = sshll.u32 [#allocation2], 4
      %s18 = int_to_ptr.vmem [resolvable:$true] %s17
      %20 = dma.hbm_to_vmem [thread:$0]  %s0, 512, %s18, [#allocation3]
    $region5: #{tpu_custom_call.1} parent=1 // pred_fallthru
      _
    // Predicated region
    $region6: #{tpu_custom_call.1} parent=1 // pred_check
      _
    $region7: #{tpu_custom_call.1} parent=1 // pred_check_branch
      %22 = sbr.rel (0) target = $region9
    $region8: #{tpu_custom_call.1} parent=1 // pred_region
      %s24 = ssub.s32 32768, 32768
      %25 = vsyncadd [#allocation6], %s24
      %s26 = sshll.u32 [#allocation5], 4
      %s27 = int_to_ptr.vmem [resolvable:$true] %s26
      %32 = dma.hbm_to_vmem [thread:$0]  %s1, 32768, %s27, [#allocation6], 128, 128, 8
    $region9: #{tpu_custom_call.1} parent=1 // pred_fallthru
      _
    // Predicated region
    $region10: #{tpu_custom_call.1} parent=1 // pred_check
      _
    $region11: #{tpu_custom_call.1} parent=1 // pred_check_branch
      %34 = sbr.rel (0) target = $region13
    $region12: #{tpu_custom_call.1} parent=1 // pred_region
      _
    $region13: #{tpu_custom_call.1} parent=1 // pred_fallthru
      _
    // Predicated region
    $region14: #{tpu_custom_call.1} parent=1 // pred_check
      _
    $region15: #{tpu_custom_call.1} parent=1 // pred_check_branch
      %36 = sbr.rel (0) target = $region17
    $region16: #{tpu_custom_call.1} parent=1 // pred_region
      %37 = dma.done [#allocation3], 512
    $region17: #{tpu_custom_call.1} parent=1 // pred_fallthru
      _
    // Predicated region
    $region18: #{tpu_custom_call.1} parent=1 // pred_check
      _
    $region19: #{tpu_custom_call.1} parent=1 // pred_check_branch
      %39 = sbr.rel (0) target = $region21
    $region20: #{tpu_custom_call.1} parent=1 // pred_region
      %40 = dma.done [#allocation6], 32768
    $region21: #{tpu_custom_call.1} parent=1 // pred_fallthru
      _
    %v41 = vld [vmem:[#allocation2] sm:$0xff]
    %v42 = vld [vmem:[#allocation2 + $0x8] sm:$0xff]
    %v43 = vld [vmem:[#allocation2 + $0x10] sm:$0xff]
    %v44 = vld [vmem:[#allocation2 + $0x18] sm:$0xff]
    %v45 = vmax.f32 %v41, 0.0
    %v46 = vmax.f32 %v42, 0.0
    %v47 = vmax.f32 %v43, 0.0
    %v48 = vmax.f32 %v44, 0.0
    %v49 = vld [vmem:[#allocation5] sm:$0xff]
    %v50 = vld [vmem:[#allocation5 + $0x8] sm:$0xff]
    %v51 = vld [vmem:[#allocation5 + $0x10] sm:$0xff]
    %v52 = vld [vmem:[#allocation5 + $0x18] sm:$0xff]
    %v53 = vld [vmem:[#allocation5 + $0x20] sm:$0xff]
    %v54 = vld [vmem:[#allocation5 + $0x28] sm:$0xff]
    %v55 = vld [vmem:[#allocation5 + $0x30] sm:$0xff]
    %v56 = vld [vmem:[#allocation5 + $0x38] sm:$0xff]
    %v57 = vld [vmem:[#allocation5 + $0x40] sm:$0xff]
    %v58 = vld [vmem:[#allocation5 + $0x48] sm:$0xff]
    %v59 = vld [vmem:[#allocation5 + $0x50] sm:$0xff]
    %v60 = vld [vmem:[#allocation5 + $0x58] sm:$0xff]
    %v61 = vld [vmem:[#allocation5 + $0x60] sm:$0xff]
    %v62 = vld [vmem:[#allocation5 + $0x68] sm:$0xff]
    %v63 = vld [vmem:[#allocation5 + $0x70] sm:$0xff]
    %v64 = vld [vmem:[#allocation5 + $0x78] sm:$0xff]
    %v65 = vld [vmem:[#allocation5 + $0x80] sm:$0xff]
    %v66 = vld [vmem:[#allocation5 + $0x88] sm:$0xff]
    %v67 = vld [vmem:[#allocation5 + $0x90] sm:$0xff]
    %v68 = vld [vmem:[#allocation5 + $0x98] sm:$0xff]
    %v69 = vld [vmem:[#allocation5 + $0xa0] sm:$0xff]
    %v70 = vld [vmem:[#allocation5 + $0xa8] sm:$0xff]
    %v71 = vld [vmem:[#allocation5 + $0xb0] sm:$0xff]
    %v72 = vld [vmem:[#allocation5 + $0xb8] sm:$0xff]
    %v73 = vld [vmem:[#allocation5 + $0xc0] sm:$0xff]
    %v74 = vld [vmem:[#allocation5 + $0xc8] sm:$0xff]
    %v75 = vld [vmem:[#allocation5 + $0xd0] sm:$0xff]
    %v76 = vld [vmem:[#allocation5 + $0xd8] sm:$0xff]
    %v77 = vld [vmem:[#allocation5 + $0xe0] sm:$0xff]
    %v78 = vld [vmem:[#allocation5 + $0xe8] sm:$0xff]
    %v79 = vld [vmem:[#allocation5 + $0xf0] sm:$0xff]
    %v80 = vld [vmem:[#allocation5 + $0xf8] sm:$0xff]
    %v81 = vld [vmem:[#allocation5 + $0x100] sm:$0xff]
    %v82 = vld [vmem:[#allocation5 + $0x108] sm:$0xff]
    %v83 = vld [vmem:[#allocation5 + $0x110] sm:$0xff]
    %v84 = vld [vmem:[#allocation5 + $0x118] sm:$0xff]
    %v85 = vld [vmem:[#allocation5 + $0x120] sm:$0xff]
    %v86 = vld [vmem:[#allocation5 + $0x128] sm:$0xff]
    %v87 = vld [vmem:[#allocation5 + $0x130] sm:$0xff]
    %v88 = vld [vmem:[#allocation5 + $0x138] sm:$0xff]
    %v89 = vld [vmem:[#allocation5 + $0x140] sm:$0xff]
    %v90 = vld [vmem:[#allocation5 + $0x148] sm:$0xff]
    %v91 = vld [vmem:[#allocation5 + $0x150] sm:$0xff]
    %v92 = vld [vmem:[#allocation5 + $0x158] sm:$0xff]
    %v93 = vld [vmem:[#allocation5 + $0x160] sm:$0xff]
    %v94 = vld [vmem:[#allocation5 + $0x168] sm:$0xff]
    %v95 = vld [vmem:[#allocation5 + $0x170] sm:$0xff]
    %v96 = vld [vmem:[#allocation5 + $0x178] sm:$0xff]
    %v97 = vld [vmem:[#allocation5 + $0x180] sm:$0xff]
    %v98 = vld [vmem:[#allocation5 + $0x188] sm:$0xff]
    %v99 = vld [vmem:[#allocation5 + $0x190] sm:$0xff]
    %v100 = vld [vmem:[#allocation5 + $0x198] sm:$0xff]
    %v101 = vld [vmem:[#allocation5 + $0x1a0] sm:$0xff]
    %v102 = vld [vmem:[#allocation5 + $0x1a8] sm:$0xff]
    %v103 = vld [vmem:[#allocation5 + $0x1b0] sm:$0xff]
    %v104 = vld [vmem:[#allocation5 + $0x1b8] sm:$0xff]
    %v105 = vld [vmem:[#allocation5 + $0x1c0] sm:$0xff]
    %v106 = vld [vmem:[#allocation5 + $0x1c8] sm:$0xff]
    %v107 = vld [vmem:[#allocation5 + $0x1d0] sm:$0xff]
    %v108 = vld [vmem:[#allocation5 + $0x1d8] sm:$0xff]
    %v109 = vld [vmem:[#allocation5 + $0x1e0] sm:$0xff]
    %v110 = vld [vmem:[#allocation5 + $0x1e8] sm:$0xff]
    %v111 = vld [vmem:[#allocation5 + $0x1f0] sm:$0xff]
    %v112 = vld [vmem:[#allocation5 + $0x1f8] sm:$0xff]
    %v113 = vld [vmem:[#allocation5 + $0x200] sm:$0xff]
    %v114 = vld [vmem:[#allocation5 + $0x208] sm:$0xff]
    %v115 = vld [vmem:[#allocation5 + $0x210] sm:$0xff]
    %v116 = vld [vmem:[#allocation5 + $0x218] sm:$0xff]
    %v117 = vld [vmem:[#allocation5 + $0x220] sm:$0xff]
    %v118 = vld [vmem:[#allocation5 + $0x228] sm:$0xff]
    %v119 = vld [vmem:[#allocation5 + $0x230] sm:$0xff]
    %v120 = vld [vmem:[#allocation5 + $0x238] sm:$0xff]
    %v121 = vld [vmem:[#allocation5 + $0x240] sm:$0xff]
    %v122 = vld [vmem:[#allocation5 + $0x248] sm:$0xff]
    %v123 = vld [vmem:[#allocation5 + $0x250] sm:$0xff]
    %v124 = vld [vmem:[#allocation5 + $0x258] sm:$0xff]
    %v125 = vld [vmem:[#allocation5 + $0x260] sm:$0xff]
    %v126 = vld [vmem:[#allocation5 + $0x268] sm:$0xff]
    %v127 = vld [vmem:[#allocation5 + $0x270] sm:$0xff]
    %v128 = vld [vmem:[#allocation5 + $0x278] sm:$0xff]
    %v129 = vld [vmem:[#allocation5 + $0x280] sm:$0xff]
    %v130 = vld [vmem:[#allocation5 + $0x288] sm:$0xff]
    %v131 = vld [vmem:[#allocation5 + $0x290] sm:$0xff]
    %v132 = vld [vmem:[#allocation5 + $0x298] sm:$0xff]
    %v133 = vld [vmem:[#allocation5 + $0x2a0] sm:$0xff]
    %v134 = vld [vmem:[#allocation5 + $0x2a8] sm:$0xff]
    %v135 = vld [vmem:[#allocation5 + $0x2b0] sm:$0xff]
    %v136 = vld [vmem:[#allocation5 + $0x2b8] sm:$0xff]
    %v137 = vld [vmem:[#allocation5 + $0x2c0] sm:$0xff]
    %v138 = vld [vmem:[#allocation5 + $0x2c8] sm:$0xff]
    %v139 = vld [vmem:[#allocation5 + $0x2d0] sm:$0xff]
    %v140 = vld [vmem:[#allocation5 + $0x2d8] sm:$0xff]
    %v141 = vld [vmem:[#allocation5 + $0x2e0] sm:$0xff]
    %v142 = vld [vmem:[#allocation5 + $0x2e8] sm:$0xff]
    %v143 = vld [vmem:[#allocation5 + $0x2f0] sm:$0xff]
    %v144 = vld [vmem:[#allocation5 + $0x2f8] sm:$0xff]
    %v145 = vld [vmem:[#allocation5 + $0x300] sm:$0xff]
    %v146 = vld [vmem:[#allocation5 + $0x308] sm:$0xff]
    %v147 = vld [vmem:[#allocation5 + $0x310] sm:$0xff]
    %v148 = vld [vmem:[#allocation5 + $0x318] sm:$0xff]
    %v149 = vld [vmem:[#allocation5 + $0x320] sm:$0xff]
    %v150 = vld [vmem:[#allocation5 + $0x328] sm:$0xff]
    %v151 = vld [vmem:[#allocation5 + $0x330] sm:$0xff]
    %v152 = vld [vmem:[#allocation5 + $0x338] sm:$0xff]
    %v153 = vld [vmem:[#allocation5 + $0x340] sm:$0xff]
    %v154 = vld [vmem:[#allocation5 + $0x348] sm:$0xff]
    %v155 = vld [vmem:[#allocation5 + $0x350] sm:$0xff]
    %v156 = vld [vmem:[#allocation5 + $0x358] sm:$0xff]
    %v157 = vld [vmem:[#allocation5 + $0x360] sm:$0xff]
    %v158 = vld [vmem:[#allocation5 + $0x368] sm:$0xff]
    %v159 = vld [vmem:[#allocation5 + $0x370] sm:$0xff]
    %v160 = vld [vmem:[#allocation5 + $0x378] sm:$0xff]
    %v161 = vld [vmem:[#allocation5 + $0x380] sm:$0xff]
    %v162 = vld [vmem:[#allocation5 + $0x388] sm:$0xff]
    %v163 = vld [vmem:[#allocation5 + $0x390] sm:$0xff]
    %v164 = vld [vmem:[#allocation5 + $0x398] sm:$0xff]
    %v165 = vld [vmem:[#allocation5 + $0x3a0] sm:$0xff]
    %v166 = vld [vmem:[#allocation5 + $0x3a8] sm:$0xff]
    %v167 = vld [vmem:[#allocation5 + $0x3b0] sm:$0xff]
    %v168 = vld [vmem:[#allocation5 + $0x3b8] sm:$0xff]
    %v169 = vld [vmem:[#allocation5 + $0x3c0] sm:$0xff]
    %v170 = vld [vmem:[#allocation5 + $0x3c8] sm:$0xff]
    %v171 = vld [vmem:[#allocation5 + $0x3d0] sm:$0xff]
    %v172 = vld [vmem:[#allocation5 + $0x3d8] sm:$0xff]
    %v173 = vld [vmem:[#allocation5 + $0x3e0] sm:$0xff]
    %v174 = vld [vmem:[#allocation5 + $0x3e8] sm:$0xff]
    %v175 = vld [vmem:[#allocation5 + $0x3f0] sm:$0xff]
    %v176 = vld [vmem:[#allocation5 + $0x3f8] sm:$0xff]
    %v177 = vld [vmem:[#allocation5 + $0x400] sm:$0xff]
    %v178 = vld [vmem:[#allocation5 + $0x408] sm:$0xff]
    %v179 = vld [vmem:[#allocation5 + $0x410] sm:$0xff]
    %v180 = vld [vmem:[#allocation5 + $0x418] sm:$0xff]
    %v181 = vld [vmem:[#allocation5 + $0x420] sm:$0xff]
    %v182 = vld [vmem:[#allocation5 + $0x428] sm:$0xff]
    %v183 = vld [vmem:[#allocation5 + $0x430] sm:$0xff]
    %v184 = vld [vmem:[#allocation5 + $0x438] sm:$0xff]
    %v185 = vld [vmem:[#allocation5 + $0x440] sm:$0xff]
    %v186 = vld [vmem:[#allocation5 + $0x448] sm:$0xff]
    %v187 = vld [vmem:[#allocation5 + $0x450] sm:$0xff]
    %v188 = vld [vmem:[#allocation5 + $0x458] sm:$0xff]
    %v189 = vld [vmem:[#allocation5 + $0x460] sm:$0xff]
    %v190 = vld [vmem:[#allocation5 + $0x468] sm:$0xff]
    %v191 = vld [vmem:[#allocation5 + $0x470] sm:$0xff]
    %v192 = vld [vmem:[#allocation5 + $0x478] sm:$0xff]
    %v193 = vld [vmem:[#allocation5 + $0x480] sm:$0xff]
    %v194 = vld [vmem:[#allocation5 + $0x488] sm:$0xff]
    %v195 = vld [vmem:[#allocation5 + $0x490] sm:$0xff]
    %v196 = vld [vmem:[#allocation5 + $0x498] sm:$0xff]
    %v197 = vld [vmem:[#allocation5 + $0x4a0] sm:$0xff]
    %v198 = vld [vmem:[#allocation5 + $0x4a8] sm:$0xff]
    %v199 = vld [vmem:[#allocation5 + $0x4b0] sm:$0xff]
    %v200 = vld [vmem:[#allocation5 + $0x4b8] sm:$0xff]
    %v201 = vld [vmem:[#allocation5 + $0x4c0] sm:$0xff]
    %v202 = vld [vmem:[#allocation5 + $0x4c8] sm:$0xff]
    %v203 = vld [vmem:[#allocation5 + $0x4d0] sm:$0xff]
    %v204 = vld [vmem:[#allocation5 + $0x4d8] sm:$0xff]
    %v205 = vld [vmem:[#allocation5 + $0x4e0] sm:$0xff]
    %v206 = vld [vmem:[#allocation5 + $0x4e8] sm:$0xff]
    %v207 = vld [vmem:[#allocation5 + $0x4f0] sm:$0xff]
    %v208 = vld [vmem:[#allocation5 + $0x4f8] sm:$0xff]
    %v209 = vld [vmem:[#allocation5 + $0x500] sm:$0xff]
    %v210 = vld [vmem:[#allocation5 + $0x508] sm:$0xff]
    %v211 = vld [vmem:[#allocation5 + $0x510] sm:$0xff]
    %v212 = vld [vmem:[#allocation5 + $0x518] sm:$0xff]
    %v213 = vld [vmem:[#allocation5 + $0x520] sm:$0xff]
    %v214 = vld [vmem:[#allocation5 + $0x528] sm:$0xff]
    %v215 = vld [vmem:[#allocation5 + $0x530] sm:$0xff]
    %v216 = vld [vmem:[#allocation5 + $0x538] sm:$0xff]
    %v217 = vld [vmem:[#allocation5 + $0x540] sm:$0xff]
    %v218 = vld [vmem:[#allocation5 + $0x548] sm:$0xff]
    %v219 = vld [vmem:[#allocation5 + $0x550] sm:$0xff]
    %v220 = vld [vmem:[#allocation5 + $0x558] sm:$0xff]
    %v221 = vld [vmem:[#allocation5 + $0x560] sm:$0xff]
    %v222 = vld [vmem:[#allocation5 + $0x568] sm:$0xff]
    %v223 = vld [vmem:[#allocation5 + $0x570] sm:$0xff]
    %v224 = vld [vmem:[#allocation5 + $0x578] sm:$0xff]
    %v225 = vld [vmem:[#allocation5 + $0x580] sm:$0xff]
    %v226 = vld [vmem:[#allocation5 + $0x588] sm:$0xff]
    %v227 = vld [vmem:[#allocation5 + $0x590] sm:$0xff]
    %v228 = vld [vmem:[#allocation5 + $0x598] sm:$0xff]
    %v229 = vld [vmem:[#allocation5 + $0x5a0] sm:$0xff]
    %v230 = vld [vmem:[#allocation5 + $0x5a8] sm:$0xff]
    %v231 = vld [vmem:[#allocation5 + $0x5b0] sm:$0xff]
    %v232 = vld [vmem:[#allocation5 + $0x5b8] sm:$0xff]
    %v233 = vld [vmem:[#allocation5 + $0x5c0] sm:$0xff]
    %v234 = vld [vmem:[#allocation5 + $0x5c8] sm:$0xff]
    %v235 = vld [vmem:[#allocation5 + $0x5d0] sm:$0xff]
    %v236 = vld [vmem:[#allocation5 + $0x5d8] sm:$0xff]
    %v237 = vld [vmem:[#allocation5 + $0x5e0] sm:$0xff]
    %v238 = vld [vmem:[#allocation5 + $0x5e8] sm:$0xff]
    %v239 = vld [vmem:[#allocation5 + $0x5f0] sm:$0xff]
    %v240 = vld [vmem:[#allocation5 + $0x5f8] sm:$0xff]
    %v241 = vld [vmem:[#allocation5 + $0x600] sm:$0xff]
    %v242 = vld [vmem:[#allocation5 + $0x608] sm:$0xff]
    %v243 = vld [vmem:[#allocation5 + $0x610] sm:$0xff]
    %v244 = vld [vmem:[#allocation5 + $0x618] sm:$0xff]
    %v245 = vld [vmem:[#allocation5 + $0x620] sm:$0xff]
    %v246 = vld [vmem:[#allocation5 + $0x628] sm:$0xff]
    %v247 = vld [vmem:[#allocation5 + $0x630] sm:$0xff]
    %v248 = vld [vmem:[#allocation5 + $0x638] sm:$0xff]
    %v249 = vld [vmem:[#allocation5 + $0x640] sm:$0xff]
    %v250 = vld [vmem:[#allocation5 + $0x648] sm:$0xff]
    %v251 = vld [vmem:[#allocation5 + $0x650] sm:$0xff]
    %v252 = vld [vmem:[#allocation5 + $0x658] sm:$0xff]
    %v253 = vld [vmem:[#allocation5 + $0x660] sm:$0xff]
    %v254 = vld [vmem:[#allocation5 + $0x668] sm:$0xff]
    %v255 = vld [vmem:[#allocation5 + $0x670] sm:$0xff]
    %v256 = vld [vmem:[#allocation5 + $0x678] sm:$0xff]
    %v257 = vld [vmem:[#allocation5 + $0x680] sm:$0xff]
    %v258 = vld [vmem:[#allocation5 + $0x688] sm:$0xff]
    %v259 = vld [vmem:[#allocation5 + $0x690] sm:$0xff]
    %v260 = vld [vmem:[#allocation5 + $0x698] sm:$0xff]
    %v261 = vld [vmem:[#allocation5 + $0x6a0] sm:$0xff]
    %v262 = vld [vmem:[#allocation5 + $0x6a8] sm:$0xff]
    %v263 = vld [vmem:[#allocation5 + $0x6b0] sm:$0xff]
    %v264 = vld [vmem:[#allocation5 + $0x6b8] sm:$0xff]
    %v265 = vld [vmem:[#allocation5 + $0x6c0] sm:$0xff]
    %v266 = vld [vmem:[#allocation5 + $0x6c8] sm:$0xff]
    %v267 = vld [vmem:[#allocation5 + $0x6d0] sm:$0xff]
    %v268 = vld [vmem:[#allocation5 + $0x6d8] sm:$0xff]
    %v269 = vld [vmem:[#allocation5 + $0x6e0] sm:$0xff]
    %v270 = vld [vmem:[#allocation5 + $0x6e8] sm:$0xff]
    %v271 = vld [vmem:[#allocation5 + $0x6f0] sm:$0xff]
    %v272 = vld [vmem:[#allocation5 + $0x6f8] sm:$0xff]
    %v273 = vld [vmem:[#allocation5 + $0x700] sm:$0xff]
    %v274 = vld [vmem:[#allocation5 + $0x708] sm:$0xff]
    %v275 = vld [vmem:[#allocation5 + $0x710] sm:$0xff]
    %v276 = vld [vmem:[#allocation5 + $0x718] sm:$0xff]
    %v277 = vld [vmem:[#allocation5 + $0x720] sm:$0xff]
    %v278 = vld [vmem:[#allocation5 + $0x728] sm:$0xff]
    %v279 = vld [vmem:[#allocation5 + $0x730] sm:$0xff]
    %v280 = vld [vmem:[#allocation5 + $0x738] sm:$0xff]
    %v281 = vld [vmem:[#allocation5 + $0x740] sm:$0xff]
    %v282 = vld [vmem:[#allocation5 + $0x748] sm:$0xff]
    %v283 = vld [vmem:[#allocation5 + $0x750] sm:$0xff]
    %v284 = vld [vmem:[#allocation5 + $0x758] sm:$0xff]
    %v285 = vld [vmem:[#allocation5 + $0x760] sm:$0xff]
    %v286 = vld [vmem:[#allocation5 + $0x768] sm:$0xff]
    %v287 = vld [vmem:[#allocation5 + $0x770] sm:$0xff]
    %v288 = vld [vmem:[#allocation5 + $0x778] sm:$0xff]
    %v289 = vld [vmem:[#allocation5 + $0x780] sm:$0xff]
    %v290 = vld [vmem:[#allocation5 + $0x788] sm:$0xff]
    %v291 = vld [vmem:[#allocation5 + $0x790] sm:$0xff]
    %v292 = vld [vmem:[#allocation5 + $0x798] sm:$0xff]
    %v293 = vld [vmem:[#allocation5 + $0x7a0] sm:$0xff]
    %v294 = vld [vmem:[#allocation5 + $0x7a8] sm:$0xff]
    %v295 = vld [vmem:[#allocation5 + $0x7b0] sm:$0xff]
    %v296 = vld [vmem:[#allocation5 + $0x7b8] sm:$0xff]
    %v297 = vld [vmem:[#allocation5 + $0x7c0] sm:$0xff]
    %v298 = vld [vmem:[#allocation5 + $0x7c8] sm:$0xff]
    %v299 = vld [vmem:[#allocation5 + $0x7d0] sm:$0xff]
    %v300 = vld [vmem:[#allocation5 + $0x7d8] sm:$0xff]
    %v301 = vld [vmem:[#allocation5 + $0x7e0] sm:$0xff]
    %v302 = vld [vmem:[#allocation5 + $0x7e8] sm:$0xff]
    %v303 = vld [vmem:[#allocation5 + $0x7f0] sm:$0xff]
    %v304 = vld [vmem:[#allocation5 + $0x7f8] sm:$0xff]
    %v305 = vld [vmem:[%s2] sm:$0x1]
    %v307 = vlaneseq
    %v308 = vshrl.u32 %v307, 7
    %v309 = vsub.s32 0, %v308
    %v310 = vrot.slane %v305, %v309
    %v316 = vcombine.high %v45, %v45
    %v318 = vunpack.c.l.s4 1983009808
    %v319 = vunpack.c.0.s8 %v318
    %v320 = vlaneseq
    %v321 = vshrl.u32 %v320, 7
    %v322 = vsub.s32 %v319, %v321
    %v323 = vrot.slane %v45, %v322
    %v325 = vunpack.c.l.s4 1983009808
    %v326 = vunpack.c.0.s8 %v325
    %v327 = vlaneseq
    %v328 = vshrl.u32 %v327, 7
    %v329 = vsub.s32 %v326, %v328
    %v330 = vrot.slane %v316, %v329
    %v331 = vcombine.high %v323, %v323
    %v332 = vcombine.high %v330, %v330
    %v333 = vcombine.high %v46, %v46
    %v335 = vunpack.c.l.s4 1983009808
    %v336 = vunpack.c.0.s8 %v335
    %v337 = vlaneseq
    %v338 = vshrl.u32 %v337, 7
    %v339 = vsub.s32 %v336, %v338
    %v340 = vrot.slane %v46, %v339
    %v342 = vunpack.c.l.s4 1983009808
    %v343 = vunpack.c.0.s8 %v342
    %v344 = vlaneseq
    %v345 = vshrl.u32 %v344, 7
    %v346 = vsub.s32 %v343, %v345
    %v347 = vrot.slane %v333, %v346
    %v348 = vcombine.high %v340, %v340
    %v349 = vcombine.high %v347, %v347
    %v350 = vcombine.high %v47, %v47
    %v352 = vunpack.c.l.s4 1983009808
    %v353 = vunpack.c.0.s8 %v352
    %v354 = vlaneseq
    %v355 = vshrl.u32 %v354, 7
    %v356 = vsub.s32 %v353, %v355
    %v357 = vrot.slane %v47, %v356
    %v359 = vunpack.c.l.s4 1983009808
    %v360 = vunpack.c.0.s8 %v359
    %v361 = vlaneseq
    %v362 = vshrl.u32 %v361, 7
    %v363 = vsub.s32 %v360, %v362
    %v364 = vrot.slane %v350, %v363
    %v365 = vcombine.high %v357, %v357
    %v366 = vcombine.high %v364, %v364
    %v367 = vcombine.high %v48, %v48
    %v369 = vunpack.c.l.s4 1983009808
    %v370 = vunpack.c.0.s8 %v369
    %v371 = vlaneseq
    %v372 = vshrl.u32 %v371, 7
    %v373 = vsub.s32 %v370, %v372
    %v374 = vrot.slane %v48, %v373
    %v376 = vunpack.c.l.s4 1983009808
    %v377 = vunpack.c.0.s8 %v376
    %v378 = vlaneseq
    %v379 = vshrl.u32 %v378, 7
    %v380 = vsub.s32 %v377, %v379
    %v381 = vrot.slane %v367, %v380
    %v382 = vcombine.high %v374, %v374
    %v383 = vcombine.high %v381, %v381
    %400 = vmatprep.subr.mxu0 0.0
    %401 = vmatpush1.msra.mxu0 %v49
    %402 = vmatprep.subr.mxu0 0.0
    %403 = vmatpush1.msra.mxu0 %v50
    %404 = vmatprep.subr.mxu0 0.0
    %405 = vmatpush1.msra.mxu0 %v51
    %406 = vmatprep.subr.mxu0 0.0
    %407 = vmatpush1.msra.mxu0 %v52
    %408 = vmatprep.subr.mxu0 0.0
    %409 = vmatpush1.msra.mxu0 %v53
    %410 = vmatprep.subr.mxu0 0.0
    %411 = vmatpush1.msra.mxu0 %v54
    %412 = vmatprep.subr.mxu0 0.0
    %413 = vmatpush1.msra.mxu0 %v55
    %414 = vmatprep.subr.mxu0 0.0
    %415 = vmatpush1.msra.mxu0 %v56
    %416 = vmatprep.subr.mxu0 0.0
    %417 = vmatpush1.msra.mxu0 %v57
    %418 = vmatprep.subr.mxu0 0.0
    %419 = vmatpush1.msra.mxu0 %v58
    %420 = vmatprep.subr.mxu0 0.0
    %421 = vmatpush1.msra.mxu0 %v59
    %422 = vmatprep.subr.mxu0 0.0
    %423 = vmatpush1.msra.mxu0 %v60
    %424 = vmatprep.subr.mxu0 0.0
    %425 = vmatpush1.msra.mxu0 %v61
    %426 = vmatprep.subr.mxu0 0.0
    %427 = vmatpush1.msra.mxu0 %v62
    %428 = vmatprep.subr.mxu0 0.0
    %429 = vmatpush1.msra.mxu0 %v63
    %430 = vmatprep.subr.mxu0 0.0
    %431 = vmatpush1.msra.mxu0 %v64
    %432 = vmatprep.subr.mxu0 0.0
    %433 = vmatpush1.msra.mxu0 %v65
    %434 = vmatprep.subr.mxu0 0.0
    %435 = vmatpush1.msra.mxu0 %v66
    %436 = vmatprep.subr.mxu0 0.0
    %437 = vmatpush1.msra.mxu0 %v67
    %438 = vmatprep.subr.mxu0 0.0
    %439 = vmatpush1.msra.mxu0 %v68
    %440 = vmatprep.subr.mxu0 0.0
    %441 = vmatpush1.msra.mxu0 %v69
    %442 = vmatprep.subr.mxu0 0.0
    %443 = vmatpush1.msra.mxu0 %v70
    %444 = vmatprep.subr.mxu0 0.0
    %445 = vmatpush1.msra.mxu0 %v71
    %446 = vmatprep.subr.mxu0 0.0
    %447 = vmatpush1.msra.mxu0 %v72
    %448 = vmatprep.subr.mxu0 0.0
    %449 = vmatpush1.msra.mxu0 %v73
    %450 = vmatprep.subr.mxu0 0.0
    %451 = vmatpush1.msra.mxu0 %v74
    %452 = vmatprep.subr.mxu0 0.0
    %453 = vmatpush1.msra.mxu0 %v75
    %454 = vmatprep.subr.mxu0 0.0
    %455 = vmatpush1.msra.mxu0 %v76
    %456 = vmatprep.subr.mxu0 0.0
    %457 = vmatpush1.msra.mxu0 %v77
    %458 = vmatprep.subr.mxu0 0.0
    %459 = vmatpush1.msra.mxu0 %v78
    %460 = vmatprep.subr.mxu0 0.0
    %461 = vmatpush1.msra.mxu0 %v79
    %462 = vmatprep.subr.mxu0 0.0
    %463 = vmatpush1.msra.mxu0 %v80
    %464 = vmatprep.mubr.f32.mxu0 %v331
    %465 = vmatmul.mubr.f32.gmra.mrb[0].mxu0 %v323
    %v466 = vpop.f32.mrb[0].mxu0
    %v467 = vadd.f32 %v310, %v466
    %v468 = vpop.f32.mrb[0].mxu0
    %469 = vdwg.mxu0
    %470 = vmatprep.subr.mxu0 0.0
    %471 = vmatpush1.msra.mxu0 %v81
    %472 = vmatprep.subr.mxu0 0.0
    %473 = vmatpush1.msra.mxu0 %v82
    %474 = vmatprep.subr.mxu0 0.0
    %475 = vmatpush1.msra.mxu0 %v83
    %476 = vmatprep.subr.mxu0 0.0
    %477 = vmatpush1.msra.mxu0 %v84
    %478 = vmatprep.subr.mxu0 0.0
    %479 = vmatpush1.msra.mxu0 %v85
    %480 = vmatprep.subr.mxu0 0.0
    %481 = vmatpush1.msra.mxu0 %v86
    %482 = vmatprep.subr.mxu0 0.0
    %483 = vmatpush1.msra.mxu0 %v87
    %484 = vmatprep.subr.mxu0 0.0
    %485 = vmatpush1.msra.mxu0 %v88
    %486 = vmatprep.subr.mxu0 0.0
    %487 = vmatpush1.msra.mxu0 %v89
    %488 = vmatprep.subr.mxu0 0.0
    %489 = vmatpush1.msra.mxu0 %v90
    %490 = vmatprep.subr.mxu0 0.0
    %491 = vmatpush1.msra.mxu0 %v91
    %492 = vmatprep.subr.mxu0 0.0
    %493 = vmatpush1.msra.mxu0 %v92
    %494 = vmatprep.subr.mxu0 0.0
    %495 = vmatpush1.msra.mxu0 %v93
    %496 = vmatprep.subr.mxu0 0.0
    %497 = vmatpush1.msra.mxu0 %v94
    %498 = vmatprep.subr.mxu0 0.0
    %499 = vmatpush1.msra.mxu0 %v95
    %500 = vmatprep.subr.mxu0 0.0
    %501 = vmatpush1.msra.mxu0 %v96
    %502 = vmatprep.subr.mxu0 0.0
    %503 = vmatpush1.msra.mxu0 %v97
    %504 = vmatprep.subr.mxu0 0.0
    %505 = vmatpush1.msra.mxu0 %v98
    %506 = vmatprep.subr.mxu0 0.0
    %507 = vmatpush1.msra.mxu0 %v99
    %508 = vmatprep.subr.mxu0 0.0
    %509 = vmatpush1.msra.mxu0 %v100
    %510 = vmatprep.subr.mxu0 0.0
    %511 = vmatpush1.msra.mxu0 %v101
    %512 = vmatprep.subr.mxu0 0.0
    %513 = vmatpush1.msra.mxu0 %v102
    %514 = vmatprep.subr.mxu0 0.0
    %515 = vmatpush1.msra.mxu0 %v103
    %516 = vmatprep.subr.mxu0 0.0
    %517 = vmatpush1.msra.mxu0 %v104
    %518 = vmatprep.subr.mxu0 0.0
    %519 = vmatpush1.msra.mxu0 %v105
    %520 = vmatprep.subr.mxu0 0.0
    %521 = vmatpush1.msra.mxu0 %v106
    %522 = vmatprep.subr.mxu0 0.0
    %523 = vmatpush1.msra.mxu0 %v107
    %524 = vmatprep.subr.mxu0 0.0
    %525 = vmatpush1.msra.mxu0 %v108
    %526 = vmatprep.subr.mxu0 0.0
    %527 = vmatpush1.msra.mxu0 %v109
    %528 = vmatprep.subr.mxu0 0.0
    %529 = vmatpush1.msra.mxu0 %v110
    %530 = vmatprep.subr.mxu0 0.0
    %531 = vmatpush1.msra.mxu0 %v111
    %532 = vmatprep.subr.mxu0 0.0
    %533 = vmatpush1.msra.mxu0 %v112
    %534 = vmatprep.mubr.f32.mxu0 %v332
    %535 = vmatmul.mubr.f32.gmra.mrb[0].mxu0 %v330
    %v536 = vpop.f32.mrb[0].mxu0
    %v537 = vadd.f32 %v467, %v536
    %v538 = vpop.f32.mrb[0].mxu0
    %539 = vdwg.mxu0
    %540 = vmatprep.subr.mxu0 0.0
    %541 = vmatpush1.msra.mxu0 %v113
    %542 = vmatprep.subr.mxu0 0.0
    %543 = vmatpush1.msra.mxu0 %v114
    %544 = vmatprep.subr.mxu0 0.0
    %545 = vmatpush1.msra.mxu0 %v115
    %546 = vmatprep.subr.mxu0 0.0
    %547 = vmatpush1.msra.mxu0 %v116
    %548 = vmatprep.subr.mxu0 0.0
    %549 = vmatpush1.msra.mxu0 %v117
    %550 = vmatprep.subr.mxu0 0.0
    %551 = vmatpush1.msra.mxu0 %v118
    %552 = vmatprep.subr.mxu0 0.0
    %553 = vmatpush1.msra.mxu0 %v119
    %554 = vmatprep.subr.mxu0 0.0
    %555 = vmatpush1.msra.mxu0 %v120
    %556 = vmatprep.subr.mxu0 0.0
    %557 = vmatpush1.msra.mxu0 %v121
    %558 = vmatprep.subr.mxu0 0.0
    %559 = vmatpush1.msra.mxu0 %v122
    %560 = vmatprep.subr.mxu0 0.0
    %561 = vmatpush1.msra.mxu0 %v123
    %562 = vmatprep.subr.mxu0 0.0
    %563 = vmatpush1.msra.mxu0 %v124
    %564 = vmatprep.subr.mxu0 0.0
    %565 = vmatpush1.msra.mxu0 %v125
    %566 = vmatprep.subr.mxu0 0.0
    %567 = vmatpush1.msra.mxu0 %v126
    %568 = vmatprep.subr.mxu0 0.0
    %569 = vmatpush1.msra.mxu0 %v127
    %570 = vmatprep.subr.mxu0 0.0
    %571 = vmatpush1.msra.mxu0 %v128
    %572 = vmatprep.subr.mxu0 0.0
    %573 = vmatpush1.msra.mxu0 %v129
    %574 = vmatprep.subr.mxu0 0.0
    %575 = vmatpush1.msra.mxu0 %v130
    %576 = vmatprep.subr.mxu0 0.0
    %577 = vmatpush1.msra.mxu0 %v131
    %578 = vmatprep.subr.mxu0 0.0
    %579 = vmatpush1.msra.mxu0 %v132
    %580 = vmatprep.subr.mxu0 0.0
    %581 = vmatpush1.msra.mxu0 %v133
    %582 = vmatprep.subr.mxu0 0.0
    %583 = vmatpush1.msra.mxu0 %v134
    %584 = vmatprep.subr.mxu0 0.0
    %585 = vmatpush1.msra.mxu0 %v135
    %586 = vmatprep.subr.mxu0 0.0
    %587 = vmatpush1.msra.mxu0 %v136
    %588 = vmatprep.subr.mxu0 0.0
    %589 = vmatpush1.msra.mxu0 %v137
    %590 = vmatprep.subr.mxu0 0.0
    %591 = vmatpush1.msra.mxu0 %v138
    %592 = vmatprep.subr.mxu0 0.0
    %593 = vmatpush1.msra.mxu0 %v139
    %594 = vmatprep.subr.mxu0 0.0
    %595 = vmatpush1.msra.mxu0 %v140
    %596 = vmatprep.subr.mxu0 0.0
    %597 = vmatpush1.msra.mxu0 %v141
    %598 = vmatprep.subr.mxu0 0.0
    %599 = vmatpush1.msra.mxu0 %v142
    %600 = vmatprep.subr.mxu0 0.0
    %601 = vmatpush1.msra.mxu0 %v143
    %602 = vmatprep.subr.mxu0 0.0
    %603 = vmatpush1.msra.mxu0 %v144
    %604 = vmatprep.mubr.f32.mxu0 %v348
    %605 = vmatmul.mubr.f32.gmra.mrb[0].mxu0 %v340
    %v606 = vpop.f32.mrb[0].mxu0
    %v607 = vadd.f32 %v537, %v606
    %v608 = vpop.f32.mrb[0].mxu0
    %609 = vdwg.mxu0
    %610 = vmatprep.subr.mxu0 0.0
    %611 = vmatpush1.msra.mxu0 %v145
    %612 = vmatprep.subr.mxu0 0.0
    %613 = vmatpush1.msra.mxu0 %v146
    %614 = vmatprep.subr.mxu0 0.0
    %615 = vmatpush1.msra.mxu0 %v147
    %616 = vmatprep.subr.mxu0 0.0
    %617 = vmatpush1.msra.mxu0 %v148
    %618 = vmatprep.subr.mxu0 0.0
    %619 = vmatpush1.msra.mxu0 %v149
    %620 = vmatprep.subr.mxu0 0.0
    %621 = vmatpush1.msra.mxu0 %v150
    %622 = vmatprep.subr.mxu0 0.0
    %623 = vmatpush1.msra.mxu0 %v151
    %624 = vmatprep.subr.mxu0 0.0
    %625 = vmatpush1.msra.mxu0 %v152
    %626 = vmatprep.subr.mxu0 0.0
    %627 = vmatpush1.msra.mxu0 %v153
    %628 = vmatprep.subr.mxu0 0.0
    %629 = vmatpush1.msra.mxu0 %v154
    %630 = vmatprep.subr.mxu0 0.0
    %631 = vmatpush1.msra.mxu0 %v155
    %632 = vmatprep.subr.mxu0 0.0
    %633 = vmatpush1.msra.mxu0 %v156
    %634 = vmatprep.subr.mxu0 0.0
    %635 = vmatpush1.msra.mxu0 %v157
    %636 = vmatprep.subr.mxu0 0.0
    %637 = vmatpush1.msra.mxu0 %v158
    %638 = vmatprep.subr.mxu0 0.0
    %639 = vmatpush1.msra.mxu0 %v159
    %640 = vmatprep.subr.mxu0 0.0
    %641 = vmatpush1.msra.mxu0 %v160
    %642 = vmatprep.subr.mxu0 0.0
    %643 = vmatpush1.msra.mxu0 %v161
    %644 = vmatprep.subr.mxu0 0.0
    %645 = vmatpush1.msra.mxu0 %v162
    %646 = vmatprep.subr.mxu0 0.0
    %647 = vmatpush1.msra.mxu0 %v163
    %648 = vmatprep.subr.mxu0 0.0
    %649 = vmatpush1.msra.mxu0 %v164
    %650 = vmatprep.subr.mxu0 0.0
    %651 = vmatpush1.msra.mxu0 %v165
    %652 = vmatprep.subr.mxu0 0.0
    %653 = vmatpush1.msra.mxu0 %v166
    %654 = vmatprep.subr.mxu0 0.0
    %655 = vmatpush1.msra.mxu0 %v167
    %656 = vmatprep.subr.mxu0 0.0
    %657 = vmatpush1.msra.mxu0 %v168
    %658 = vmatprep.subr.mxu0 0.0
    %659 = vmatpush1.msra.mxu0 %v169
    %660 = vmatprep.subr.mxu0 0.0
    %661 = vmatpush1.msra.mxu0 %v170
    %662 = vmatprep.subr.mxu0 0.0
    %663 = vmatpush1.msra.mxu0 %v171
    %664 = vmatprep.subr.mxu0 0.0
    %665 = vmatpush1.msra.mxu0 %v172
    %666 = vmatprep.subr.mxu0 0.0
    %667 = vmatpush1.msra.mxu0 %v173
    %668 = vmatprep.subr.mxu0 0.0
    %669 = vmatpush1.msra.mxu0 %v174
    %670 = vmatprep.subr.mxu0 0.0
    %671 = vmatpush1.msra.mxu0 %v175
    %672 = vmatprep.subr.mxu0 0.0
    %673 = vmatpush1.msra.mxu0 %v176
    %674 = vmatprep.mubr.f32.mxu0 %v349
    %675 = vmatmul.mubr.f32.gmra.mrb[0].mxu0 %v347
    %v676 = vpop.f32.mrb[0].mxu0
    %v677 = vadd.f32 %v607, %v676
    %v678 = vpop.f32.mrb[0].mxu0
    %679 = vdwg.mxu0
    %680 = vmatprep.subr.mxu0 0.0
    %681 = vmatpush1.msra.mxu0 %v177
    %682 = vmatprep.subr.mxu0 0.0
    %683 = vmatpush1.msra.mxu0 %v178
    %684 = vmatprep.subr.mxu0 0.0
    %685 = vmatpush1.msra.mxu0 %v179
    %686 = vmatprep.subr.mxu0 0.0
    %687 = vmatpush1.msra.mxu0 %v180
    %688 = vmatprep.subr.mxu0 0.0
    %689 = vmatpush1.msra.mxu0 %v181
    %690 = vmatprep.subr.mxu0 0.0
    %691 = vmatpush1.msra.mxu0 %v182
    %692 = vmatprep.subr.mxu0 0.0
    %693 = vmatpush1.msra.mxu0 %v183
    %694 = vmatprep.subr.mxu0 0.0
    %695 = vmatpush1.msra.mxu0 %v184
    %696 = vmatprep.subr.mxu0 0.0
    %697 = vmatpush1.msra.mxu0 %v185
    %698 = vmatprep.subr.mxu0 0.0
    %699 = vmatpush1.msra.mxu0 %v186
    %700 = vmatprep.subr.mxu0 0.0
    %701 = vmatpush1.msra.mxu0 %v187
    %702 = vmatprep.subr.mxu0 0.0
    %703 = vmatpush1.msra.mxu0 %v188
    %704 = vmatprep.subr.mxu0 0.0
    %705 = vmatpush1.msra.mxu0 %v189
    %706 = vmatprep.subr.mxu0 0.0
    %707 = vmatpush1.msra.mxu0 %v190
    %708 = vmatprep.subr.mxu0 0.0
    %709 = vmatpush1.msra.mxu0 %v191
    %710 = vmatprep.subr.mxu0 0.0
    %711 = vmatpush1.msra.mxu0 %v192
    %712 = vmatprep.subr.mxu0 0.0
    %713 = vmatpush1.msra.mxu0 %v193
    %714 = vmatprep.subr.mxu0 0.0
    %715 = vmatpush1.msra.mxu0 %v194
    %716 = vmatprep.subr.mxu0 0.0
    %717 = vmatpush1.msra.mxu0 %v195
    %718 = vmatprep.subr.mxu0 0.0
    %719 = vmatpush1.msra.mxu0 %v196
    %720 = vmatprep.subr.mxu0 0.0
    %721 = vmatpush1.msra.mxu0 %v197
    %722 = vmatprep.subr.mxu0 0.0
    %723 = vmatpush1.msra.mxu0 %v198
    %724 = vmatprep.subr.mxu0 0.0
    %725 = vmatpush1.msra.mxu0 %v199
    %726 = vmatprep.subr.mxu0 0.0
    %727 = vmatpush1.msra.mxu0 %v200
    %728 = vmatprep.subr.mxu0 0.0
    %729 = vmatpush1.msra.mxu0 %v201
    %730 = vmatprep.subr.mxu0 0.0
    %731 = vmatpush1.msra.mxu0 %v202
    %732 = vmatprep.subr.mxu0 0.0
    %733 = vmatpush1.msra.mxu0 %v203
    %734 = vmatprep.subr.mxu0 0.0
    %735 = vmatpush1.msra.mxu0 %v204
    %736 = vmatprep.subr.mxu0 0.0
    %737 = vmatpush1.msra.mxu0 %v205
    %738 = vmatprep.subr.mxu0 0.0
    %739 = vmatpush1.msra.mxu0 %v206
    %740 = vmatprep.subr.mxu0 0.0
    %741 = vmatpush1.msra.mxu0 %v207
    %742 = vmatprep.subr.mxu0 0.0
    %743 = vmatpush1.msra.mxu0 %v208
    %744 = vmatprep.mubr.f32.mxu0 %v365
    %745 = vmatmul.mubr.f32.gmra.mrb[0].mxu0 %v357
    %v746 = vpop.f32.mrb[0].mxu0
    %v747 = vadd.f32 %v677, %v746
    %v748 = vpop.f32.mrb[0].mxu0
    %749 = vdwg.mxu0
    %750 = vmatprep.subr.mxu0 0.0
    %751 = vmatpush1.msra.mxu0 %v209
    %752 = vmatprep.subr.mxu0 0.0
    %753 = vmatpush1.msra.mxu0 %v210
    %754 = vmatprep.subr.mxu0 0.0
    %755 = vmatpush1.msra.mxu0 %v211
    %756 = vmatprep.subr.mxu0 0.0
    %757 = vmatpush1.msra.mxu0 %v212
    %758 = vmatprep.subr.mxu0 0.0
    %759 = vmatpush1.msra.mxu0 %v213
    %760 = vmatprep.subr.mxu0 0.0
    %761 = vmatpush1.msra.mxu0 %v214
    %762 = vmatprep.subr.mxu0 0.0
    %763 = vmatpush1.msra.mxu0 %v215
    %764 = vmatprep.subr.mxu0 0.0
    %765 = vmatpush1.msra.mxu0 %v216
    %766 = vmatprep.subr.mxu0 0.0
    %767 = vmatpush1.msra.mxu0 %v217
    %768 = vmatprep.subr.mxu0 0.0
    %769 = vmatpush1.msra.mxu0 %v218
    %770 = vmatprep.subr.mxu0 0.0
    %771 = vmatpush1.msra.mxu0 %v219
    %772 = vmatprep.subr.mxu0 0.0
    %773 = vmatpush1.msra.mxu0 %v220
    %774 = vmatprep.subr.mxu0 0.0
    %775 = vmatpush1.msra.mxu0 %v221
    %776 = vmatprep.subr.mxu0 0.0
    %777 = vmatpush1.msra.mxu0 %v222
    %778 = vmatprep.subr.mxu0 0.0
    %779 = vmatpush1.msra.mxu0 %v223
    %780 = vmatprep.subr.mxu0 0.0
    %781 = vmatpush1.msra.mxu0 %v224
    %782 = vmatprep.subr.mxu0 0.0
    %783 = vmatpush1.msra.mxu0 %v225
    %784 = vmatprep.subr.mxu0 0.0
    %785 = vmatpush1.msra.mxu0 %v226
    %786 = vmatprep.subr.mxu0 0.0
    %787 = vmatpush1.msra.mxu0 %v227
    %788 = vmatprep.subr.mxu0 0.0
    %789 = vmatpush1.msra.mxu0 %v228
    %790 = vmatprep.subr.mxu0 0.0
    %791 = vmatpush1.msra.mxu0 %v229
    %792 = vmatprep.subr.mxu0 0.0
    %793 = vmatpush1.msra.mxu0 %v230
    %794 = vmatprep.subr.mxu0 0.0
    %795 = vmatpush1.msra.mxu0 %v231
    %796 = vmatprep.subr.mxu0 0.0
    %797 = vmatpush1.msra.mxu0 %v232
    %798 = vmatprep.subr.mxu0 0.0
    %799 = vmatpush1.msra.mxu0 %v233
    %800 = vmatprep.subr.mxu0 0.0
    %801 = vmatpush1.msra.mxu0 %v234
    %802 = vmatprep.subr.mxu0 0.0
    %803 = vmatpush1.msra.mxu0 %v235
    %804 = vmatprep.subr.mxu0 0.0
    %805 = vmatpush1.msra.mxu0 %v236
    %806 = vmatprep.subr.mxu0 0.0
    %807 = vmatpush1.msra.mxu0 %v237
    %808 = vmatprep.subr.mxu0 0.0
    %809 = vmatpush1.msra.mxu0 %v238
    %810 = vmatprep.subr.mxu0 0.0
    %811 = vmatpush1.msra.mxu0 %v239
    %812 = vmatprep.subr.mxu0 0.0
    %813 = vmatpush1.msra.mxu0 %v240
    %814 = vmatprep.mubr.f32.mxu0 %v366
    %815 = vmatmul.mubr.f32.gmra.mrb[0].mxu0 %v364
    %v816 = vpop.f32.mrb[0].mxu0
    %v817 = vadd.f32 %v747, %v816
    %v818 = vpop.f32.mrb[0].mxu0
    %819 = vdwg.mxu0
    %820 = vmatprep.subr.mxu0 0.0
    %821 = vmatpush1.msra.mxu0 %v241
    %822 = vmatprep.subr.mxu0 0.0
    %823 = vmatpush1.msra.mxu0 %v242
    %824 = vmatprep.subr.mxu0 0.0
    %825 = vmatpush1.msra.mxu0 %v243
    %826 = vmatprep.subr.mxu0 0.0
    %827 = vmatpush1.msra.mxu0 %v244
    %828 = vmatprep.subr.mxu0 0.0
    %829 = vmatpush1.msra.mxu0 %v245
    %830 = vmatprep.subr.mxu0 0.0
    %831 = vmatpush1.msra.mxu0 %v246
    %832 = vmatprep.subr.mxu0 0.0
    %833 = vmatpush1.msra.mxu0 %v247
    %834 = vmatprep.subr.mxu0 0.0
    %835 = vmatpush1.msra.mxu0 %v248
    %836 = vmatprep.subr.mxu0 0.0
    %837 = vmatpush1.msra.mxu0 %v249
    %838 = vmatprep.subr.mxu0 0.0
    %839 = vmatpush1.msra.mxu0 %v250
    %840 = vmatprep.subr.mxu0 0.0
    %841 = vmatpush1.msra.mxu0 %v251
    %842 = vmatprep.subr.mxu0 0.0
    %843 = vmatpush1.msra.mxu0 %v252
    %844 = vmatprep.subr.mxu0 0.0
    %845 = vmatpush1.msra.mxu0 %v253
    %846 = vmatprep.subr.mxu0 0.0
    %847 = vmatpush1.msra.mxu0 %v254
    %848 = vmatprep.subr.mxu0 0.0
    %849 = vmatpush1.msra.mxu0 %v255
    %850 = vmatprep.subr.mxu0 0.0
    %851 = vmatpush1.msra.mxu0 %v256
    %852 = vmatprep.subr.mxu0 0.0
    %853 = vmatpush1.msra.mxu0 %v257
    %854 = vmatprep.subr.mxu0 0.0
    %855 = vmatpush1.msra.mxu0 %v258
    %856 = vmatprep.subr.mxu0 0.0
    %857 = vmatpush1.msra.mxu0 %v259
    %858 = vmatprep.subr.mxu0 0.0
    %859 = vmatpush1.msra.mxu0 %v260
    %860 = vmatprep.subr.mxu0 0.0
    %861 = vmatpush1.msra.mxu0 %v261
    %862 = vmatprep.subr.mxu0 0.0
    %863 = vmatpush1.msra.mxu0 %v262
    %864 = vmatprep.subr.mxu0 0.0
    %865 = vmatpush1.msra.mxu0 %v263
    %866 = vmatprep.subr.mxu0 0.0
    %867 = vmatpush1.msra.mxu0 %v264
    %868 = vmatprep.subr.mxu0 0.0
    %869 = vmatpush1.msra.mxu0 %v265
    %870 = vmatprep.subr.mxu0 0.0
    %871 = vmatpush1.msra.mxu0 %v266
    %872 = vmatprep.subr.mxu0 0.0
    %873 = vmatpush1.msra.mxu0 %v267
    %874 = vmatprep.subr.mxu0 0.0
    %875 = vmatpush1.msra.mxu0 %v268
    %876 = vmatprep.subr.mxu0 0.0
    %877 = vmatpush1.msra.mxu0 %v269
    %878 = vmatprep.subr.mxu0 0.0
    %879 = vmatpush1.msra.mxu0 %v270
    %880 = vmatprep.subr.mxu0 0.0
    %881 = vmatpush1.msra.mxu0 %v271
    %882 = vmatprep.subr.mxu0 0.0
    %883 = vmatpush1.msra.mxu0 %v272
    %884 = vmatprep.mubr.f32.mxu0 %v382
    %885 = vmatmul.mubr.f32.gmra.mrb[0].mxu0 %v374
    %v886 = vpop.f32.mrb[0].mxu0
    %v887 = vadd.f32 %v817, %v886
    %v888 = vpop.f32.mrb[0].mxu0
    %889 = vdwg.mxu0
    %890 = vmatprep.subr.mxu0 0.0
    %891 = vmatpush1.msra.mxu0 %v273
    %892 = vmatprep.subr.mxu0 0.0
    %893 = vmatpush1.msra.mxu0 %v274
    %894 = vmatprep.subr.mxu0 0.0
    %895 = vmatpush1.msra.mxu0 %v275
    %896 = vmatprep.subr.mxu0 0.0
    %897 = vmatpush1.msra.mxu0 %v276
    %898 = vmatprep.subr.mxu0 0.0
    %899 = vmatpush1.msra.mxu0 %v277
    %900 = vmatprep.subr.mxu0 0.0
    %901 = vmatpush1.msra.mxu0 %v278
    %902 = vmatprep.subr.mxu0 0.0
    %903 = vmatpush1.msra.mxu0 %v279
    %904 = vmatprep.subr.mxu0 0.0
    %905 = vmatpush1.msra.mxu0 %v280
    %906 = vmatprep.subr.mxu0 0.0
    %907 = vmatpush1.msra.mxu0 %v281
    %908 = vmatprep.subr.mxu0 0.0
    %909 = vmatpush1.msra.mxu0 %v282
    %910 = vmatprep.subr.mxu0 0.0
    %911 = vmatpush1.msra.mxu0 %v283
    %912 = vmatprep.subr.mxu0 0.0
    %913 = vmatpush1.msra.mxu0 %v284
    %914 = vmatprep.subr.mxu0 0.0
    %915 = vmatpush1.msra.mxu0 %v285
    %916 = vmatprep.subr.mxu0 0.0
    %917 = vmatpush1.msra.mxu0 %v286
    %918 = vmatprep.subr.mxu0 0.0
    %919 = vmatpush1.msra.mxu0 %v287
    %920 = vmatprep.subr.mxu0 0.0
    %921 = vmatpush1.msra.mxu0 %v288
    %922 = vmatprep.subr.mxu0 0.0
    %923 = vmatpush1.msra.mxu0 %v289
    %924 = vmatprep.subr.mxu0 0.0
    %925 = vmatpush1.msra.mxu0 %v290
    %926 = vmatprep.subr.mxu0 0.0
    %927 = vmatpush1.msra.mxu0 %v291
    %928 = vmatprep.subr.mxu0 0.0
    %929 = vmatpush1.msra.mxu0 %v292
    %930 = vmatprep.subr.mxu0 0.0
    %931 = vmatpush1.msra.mxu0 %v293
    %932 = vmatprep.subr.mxu0 0.0
    %933 = vmatpush1.msra.mxu0 %v294
    %934 = vmatprep.subr.mxu0 0.0
    %935 = vmatpush1.msra.mxu0 %v295
    %936 = vmatprep.subr.mxu0 0.0
    %937 = vmatpush1.msra.mxu0 %v296
    %938 = vmatprep.subr.mxu0 0.0
    %939 = vmatpush1.msra.mxu0 %v297
    %940 = vmatprep.subr.mxu0 0.0
    %941 = vmatpush1.msra.mxu0 %v298
    %942 = vmatprep.subr.mxu0 0.0
    %943 = vmatpush1.msra.mxu0 %v299
    %944 = vmatprep.subr.mxu0 0.0
    %945 = vmatpush1.msra.mxu0 %v300
    %946 = vmatprep.subr.mxu0 0.0
    %947 = vmatpush1.msra.mxu0 %v301
    %948 = vmatprep.subr.mxu0 0.0
    %949 = vmatpush1.msra.mxu0 %v302
    %950 = vmatprep.subr.mxu0 0.0
    %951 = vmatpush1.msra.mxu0 %v303
    %952 = vmatprep.subr.mxu0 0.0
    %953 = vmatpush1.msra.mxu0 %v304
    %954 = vmatprep.mubr.f32.mxu0 %v383
    %955 = vmatmul.mubr.f32.gmra.mrb[0].mxu0 %v381
    %v956 = vpop.f32.mrb[0].mxu0
    %v957 = vadd.f32 %v887, %v956
    %v958 = vpop.f32.mrb[0].mxu0
    %959 = vdwg.mxu0
    %960 = vst [vmem:[#allocation7] sm:$0x3] %v957
    // Predicated region
    $region22: #{tpu_custom_call.1} parent=1 // pred_check
      _
    $region23: #{tpu_custom_call.1} parent=1 // pred_check_branch
      %962 = sbr.rel (0) target = $region25
    $region24: #{tpu_custom_call.1} parent=1 // pred_region
      %s964 = ssub.s32 32, 32
      %965 = vsyncadd [#allocation4], %s964
      %s967 = sshll.u32 [#allocation7], 4
      %s968 = int_to_ptr.vmem [resolvable:$true] %s967
      %970 = dma.vmem_to_hbm [thread:$0]  %s968, 32, %s3, [#allocation4]
    $region25: #{tpu_custom_call.1} parent=1 // pred_fallthru
      _
    // Predicated region
    $region26: #{tpu_custom_call.1} parent=1 // pred_check
      _
    $region27: #{tpu_custom_call.1} parent=1 // pred_check_branch
      %972 = sbr.rel (0) target = $region29
    $region28: #{tpu_custom_call.1} parent=1 // pred_region
      %973 = dma.done [#allocation4], 32
    $region29: #{tpu_custom_call.1} parent=1 // pred_fallthru
      _
    %974 = vsyncpa [#allocation3], 1
    %975 = vsyncpa [#allocation6], 1
    %976 = vsyncpa [#allocation4], 1

</llo_original>
